<compile_context>
chip_gen: v7x
topology: tpu7x:2x2x1
jax: 0.10.0
libtpu: 0.0.40
codegen_flags: <defaults>
</compile_context>

<pallas_src>
import functools
import math

import jax
import jax.numpy as jnp
from jax.experimental import pallas as pl
from jax.experimental.pallas import tpu as pltpu


def _identity_forward_kernel(x_ref, o_ref):
    # TODO(synk): Model.forward is abstract (body = `pass`); identity is the
    # only faithful device-side realization of the base-class contract.
    o_ref[...] = x_ref[...]


def _tpu_budget():
    """Generation-aware (block_bytes, vmem_limit_bytes)."""
    vmem = 64 * 1024 * 1024
    try:
        info = pltpu.get_tpu_info()
        vmem = int(getattr(info, "vmem_capacity_bytes", vmem))
    except Exception:
        pass
    if vmem >= 96 * 1024 * 1024:
        # v5e / v6e: 128 MiB physical VMEM -> 16 MiB blocks, 96 MiB scoped.
        return 16 * 1024 * 1024, 96 * 1024 * 1024
    # v7x: 64 MiB physical VMEM -> 8 MiB blocks, 48 MiB scoped.
    return 8 * 1024 * 1024, 48 * 1024 * 1024


def _choose_layout(total: int, itemsize: int, target_block_bytes: int):
    """Lane-dense [rows, lanes] layout + roofline-sized sublane tile.

    `total` must be a multiple of 128 (caller guarantees it).
    """
    lanes = 128
    for w in (4096, 2048, 1024, 512, 256, 128):
        if total % w == 0:
            lanes = w
            break
    rows = total // lanes

    # Dtype-native sublane multiple: 8 (f32), 16 (bf16/f16), 32 (int8/fp8).
    sub = max(8, 32 // max(itemsize, 1))
    desired = max(sub, (target_block_bytes // (lanes * itemsize)) // sub * sub)
    # If rows < desired (or rows < sub) the block spans the full rows dim,
    # which is always a legal block shape (equals the array dim).
    row_tile = min(desired, rows)
    return lanes, rows, row_tile


@functools.partial(jax.jit, static_argnames=("target_block_bytes", "vmem_limit_bytes"))
def _pallas_identity_copy(x: jax.Array, *, target_block_bytes: int, vmem_limit_bytes: int):
    """Materializing identity: one HBM read + one HBM write through Pallas."""
    orig_shape = x.shape
    total = math.prod(orig_shape) if orig_shape else 1
    itemsize = jnp.dtype(x.dtype).itemsize

    lanes, rows, row_tile = _choose_layout(total, itemsize, target_block_bytes)

    # Row-major flatten to a lane-dense slab (layout plumbing, stays inside jit).
    x2d = x.reshape(rows, lanes)

    grid = (pl.cdiv(rows, row_tile),)
    out2d = pl.pallas_call(
        _identity_forward_kernel,
        out_shape=jax.ShapeDtypeStruct((rows, lanes), x.dtype),
        grid_spec=pltpu.PrefetchScalarGridSpec(
            num_scalar_prefetch=0,
            grid=grid,
            in_specs=[pl.BlockSpec((row_tile, lanes), lambda i: (i, 0))],
            out_specs=pl.BlockSpec((row_tile, lanes), lambda i: (i, 0)),
        ),
        compiler_params=pltpu.CompilerParams(
            dimension_semantics=("parallel",),
            vmem_limit_bytes=vmem_limit_bytes,
        ),
    )(x2d)

    return out2d.reshape(orig_shape)


def base_model_forward(x: jax.Array, *, materialize: bool = False) -> jax.Array:
    """Forward for the abstract base `Model`.

    The abstract forward has no compute, so the default (recommended) path is
    a zero-cost pass-through.  Set `materialize=True` to run the Pallas copy
    kernel (fresh output buffer, pure HBM-bandwidth-bound).
    """
    if not materialize:
        return x  # preferred path per review: no kernel, no HBM traffic.

    total = math.prod(x.shape) if x.shape else 1
    if total == 0 or total % 128 != 0:
        # TODO(synk): ragged (non-128-multiple) sizes skip the device copy
        # rather than paying pad+slice HBM passes; identity is still exact.
        return x

    block_bytes, vmem_limit = _tpu_budget()
    return _pallas_identity_copy(
        x, target_block_bytes=block_bytes, vmem_limit_bytes=vmem_limit
    )


if __name__ == "__main__":
    key = jax.random.PRNGKey(0)
    # Small NCHW input consistent with a generic vision-style model input.
    x = jax.random.normal(key, (2, 4, 16, 16), dtype=jnp.float32)

    # 1) Recommended zero-cost identity path (no kernel launched).
    y_fast = base_model_forward(x)
    assert y_fast is x

    # 2) Materializing path — exercises the Pallas kernel on TPU.
    y = base_model_forward(x, materialize=True)
    y = jax.block_until_ready(y)

    assert y.shape == x.shape and y.dtype == x.dtype
    assert bool(jnp.allclose(y, x)), "identity forward mismatch"
    print("KERNEL_OK")
</pallas_src>

<mosaic_0001>
module attributes {stable_mosaic.version = 11 : i64} {
  func.func @_identity_forward_kernel(%arg0: i32, %arg1: memref<1x2048xf32, #tpu.memory_space<vmem>>, %arg2: memref<1x2048xf32, #tpu.memory_space<vmem>>) attributes {dimension_semantics = [#tpu.dimension_semantics<parallel>], iteration_bounds = array<i64: 1>, scalar_prefetch = 0 : i64, scratch_operands = 0 : i64, tpu.core_type = #tpu.core_type<tc>, window_params = [{transform_indices = @transform_0, window_bounds = array<i64: 1, 2048>}, {transform_indices = @transform_1, window_bounds = array<i64: 1, 2048>}]} {
    %c0 = arith.constant 0 : index
    %c0_0 = arith.constant 0 : index
    %0 = vector.load %arg1[%c0, %c0_0] : memref<1x2048xf32, #tpu.memory_space<vmem>>, vector<1x2048xf32>
    %c0_1 = arith.constant 0 : index
    %c0_2 = arith.constant 0 : index
    %1 = vector.load %arg2[%c0_1, %c0_2] : memref<1x2048xf32, #tpu.memory_space<vmem>>, vector<1x2048xf32>
    tpu.vector_store %arg2[%c0_1, %c0_2], %0 {strides = array<i32>} : memref<1x2048xf32, #tpu.memory_space<vmem>>, vector<1x2048xf32>,
    return
  }
  func.func @transform_0(%arg0: i32) -> (i32, i32) {
    %c0_i32 = arith.constant 0 : i32
    %c0_i32_0 = arith.constant 0 : i32
    return %arg0, %c0_i32 : i32, i32
  }
  func.func @transform_1(%arg0: i32) -> (i32, i32) {
    %c0_i32 = arith.constant 0 : i32
    %c0_i32_0 = arith.constant 0 : i32
    return %arg0, %c0_i32 : i32, i32
  }
}

</mosaic_0001>

<llo_original>
// kernel: _pallas_identity_copy.1
$region0: #{_pallas_identity_copy.1}
  #allocation0 [shape = 'u32[]', space=smem, size = 0x4, offset = 0x4, fixed_abs, tag = 'smem constant byte address 0x4 - core index']
  #allocation1 [shape = 'u32[144,128]{1,0:T(1,128)}', space=vmem, size = 0x12000, scoped, tag = 'internal scratch']
  %s0 = inlined_call_operand.vmem [shape: f32[1,2048], index: 0, kind: input, shape index: {}]
  %s1 = inlined_call_operand.vmem [shape: f32[1,2048], index: 1, kind: output, shape index: {}]
  %s2 = sld [smem:[#allocation0]]
  $region14: #{_pallas_identity_copy.1} parent=0
    _
  %s4 = ssub.s32 1, %s2
  %s5 = scalar_select 0, %s4, %s2
  // Predicated region
  $region2: #{_pallas_identity_copy.1} parent=0 // pred_check
    _
  $region3: #{_pallas_identity_copy.1} parent=0 // pred_check_branch
    %7 = sbr.rel (0) target = $region5
  $region4: #{_pallas_identity_copy.1} parent=0 // pred_region
    _
  $region5: #{_pallas_identity_copy.1} parent=0 // pred_fallthru
    _
  %v8 = vld [vmem:[%s0] sm:$0xff]
  %v9 = vld [vmem:[%s0 + $0x8] sm:$0xff]
  %10 = vst [vmem:[%s1] sm:$0xff] %v8
  %11 = vst [vmem:[%s1 + $0x8] sm:$0xff] %v9
  // Predicated region
  $region6: #{_pallas_identity_copy.1} parent=0 // pred_check
    _
  $region7: #{_pallas_identity_copy.1} parent=0 // pred_check_branch
    %13 = sbr.rel (0) target = $region9
  $region8: #{_pallas_identity_copy.1} parent=0 // pred_region
    _
  $region9: #{_pallas_identity_copy.1} parent=0 // pred_fallthru
    _
  // Predicated region
  $region10: #{_pallas_identity_copy.1} parent=0 // pred_check
    _
  $region11: #{_pallas_identity_copy.1} parent=0 // pred_check_branch
    %15 = sbr.rel (0) target = $region13
  $region12: #{_pallas_identity_copy.1} parent=0 // pred_region
    _
  $region13: #{_pallas_identity_copy.1} parent=0 // pred_fallthru
    _

</llo_original>
